<compile_context>
chip_gen: v7x
topology: tpu7x:2x2x1
jax: 0.10.0
libtpu: 0.0.40
codegen_flags: <defaults>
</compile_context>

<pallas_src>
import functools
from typing import NamedTuple, Optional

import jax
import jax.numpy as jnp
from jax.experimental import pallas as pl
from jax.experimental.pallas import tpu as pltpu


# --------------------------------------------------------------------------
# Helpers
# --------------------------------------------------------------------------
def _round_up(x, m):
    return ((x + m - 1) // m) * m


def _vmem_budget_and_cap():
    """(tile_budget_bytes, vmem_limit_cap_bytes), generation-aware."""
    cap = None
    try:
        cap = int(pltpu.get_tpu_info().vmem_capacity_bytes)
    except Exception:
        cap = None
    if cap is None:
        # Unknown generation: be conservative (valid even on v7x's 64 MiB/TC).
        return 24 * 2**20, 48 * 2**20
    if cap <= 64 * 2**20:            # v7x: 64 MiB per TensorCore
        return 28 * 2**20, 52 * 2**20
    return 56 * 2**20, 96 * 2**20    # v5e / v6e: 128 MiB


def _pick_tile_m(m, h, n_pad, in_isz, out_isz, fixed_bytes, budget):
    """Largest M tile whose double-buffered in/out tiles (+ resident fixed
    bytes) fit the budget. Never pick a tile wildly larger than M itself."""
    m_cap = max(8, _round_up(m, 8))
    for tile in (4096, 2048, 1024, 512, 256, 128, 64, 32, 16, 8):
        if tile > m_cap and tile != 8:
            continue
        need = fixed_bytes + 2 * tile * h * in_isz + 2 * tile * n_pad * out_isz
        if need <= budget:
            return tile, need
    tile = 8
    return tile, fixed_bytes + 2 * tile * h * in_isz + 2 * tile * n_pad * out_isz


def _pick_tile_m_ktiled(m, tile_k, n_pad, in_isz, w_isz, out_isz, budget):
    m_cap = max(8, _round_up(m, 8))
    fixed = 2 * tile_k * n_pad * w_isz + 2 * n_pad * 4  # streamed W + bias
    for tile in (2048, 1024, 512, 256, 128, 64, 32, 16, 8):
        if tile > m_cap and tile != 8:
            continue
        need = (fixed + 2 * tile * tile_k * in_isz
                + 2 * tile * n_pad * out_isz + tile * n_pad * 4)
        if need <= budget:
            return tile, need
    tile = 8
    need = (fixed + 2 * tile * tile_k * in_isz
            + 2 * tile * n_pad * out_isz + tile * n_pad * 4)
    return tile, need


# --------------------------------------------------------------------------
# Kernels
# --------------------------------------------------------------------------
def _glm_fused_kernel(f_ref, w_ref, b_ref, o_ref):
    """One fused lane-dense matmul + bias; single fused output tile."""
    acc = jnp.dot(f_ref[...], w_ref[...], preferred_element_type=jnp.float32)
    o_ref[...] = (acc + b_ref[...]).astype(o_ref.dtype)


def _glm_split_kernel(f_ref, w_ref, b_ref, ox_ref, op_ref, *, n_dense):
    """One fused MXU pass, split stores: x head (n_dense cols, 128-multiple)
    and the padded probs head. Both stores are lane-aligned (no masked vst)."""
    acc = jnp.dot(f_ref[...], w_ref[...], preferred_element_type=jnp.float32)
    acc = acc + b_ref[...]
    ox_ref[...] = acc[:, :n_dense].astype(ox_ref.dtype)
    op_ref[...] = acc[:, n_dense:].astype(op_ref.dtype)


def _glm_fused_ktiled_kernel(f_ref, w_ref, b_ref, o_ref, acc_ref):
    """Large-H guard path: K-tiled reduction with an f32 accumulator scratch."""
    @pl.when(pl.program_id(1) == 0)
    def _():
        acc_ref[...] = jnp.zeros_like(acc_ref)

    acc_ref[...] += jnp.dot(f_ref[...], w_ref[...],
                            preferred_element_type=jnp.float32)

    @pl.when(pl.program_id(1) == pl.num_programs(1) - 1)
    def _():
        o_ref[...] = (acc_ref[...] + b_ref[...]).astype(o_ref.dtype)


# --------------------------------------------------------------------------
# Static weight preparation (done once — hoisted off the per-call path)
# --------------------------------------------------------------------------
class GLMMultiHeadParams(NamedTuple):
    w_cat: jax.Array          # (H, n_pad) fused [dense | prob | zero-pad]
    b_cat: jax.Array          # (1, n_pad) float32 fused bias
    hidden_size: int
    num_pred: int
    num_pc: int
    predict_probs: bool
    n_dense: int
    n_prob: int
    n_prob_pad: int           # padded probs width when split_outputs, else 0
    n_pad: int
    split_outputs: bool
    compute_dtype: Optional[jnp.dtype]


def prepare_glm_multihead_params(w_dense, b_dense, w_prob=None, b_prob=None, *,
                                 num_pred, num_pc, predict_probs=True,
                                 compute_dtype=None):
    """Fuse/pad/cast the two Linear heads ONCE.

    Weights are stored transposed vs. torch: w_dense (H, num_pred*num_pc),
    w_prob (H, num_pred) so the matmul output is lane-dense along out_features.
    """
    H = w_dense.shape[0]
    n_dense = num_pred * num_pc
    assert w_dense.shape == (H, n_dense)

    if predict_probs:
        assert w_prob is not None and b_prob is not None
        n_prob = num_pred
        split_outputs = (n_dense % 128 == 0)
        if split_outputs:
            n_prob_pad = _round_up(n_prob, 128)
            n_pad = n_dense + n_prob_pad
        else:
            n_prob_pad = 0
            n_pad = max(128, _round_up(n_dense + n_prob, 128))
        w_cat = jnp.concatenate([w_dense, w_prob], axis=1)
        b_cat = jnp.concatenate([b_dense, b_prob], axis=0)
    else:
        n_prob, n_prob_pad = 0, 0
        split_outputs = False
        n_pad = max(128, _round_up(n_dense, 128))
        w_cat, b_cat = w_dense, b_dense

    pad_cols = n_pad - w_cat.shape[1]
    if pad_cols > 0:
        w_cat = jnp.pad(w_cat, ((0, 0), (0, pad_cols)))
        b_cat = jnp.pad(b_cat, ((0, pad_cols),))

    if compute_dtype is not None:
        w_cat = w_cat.astype(compute_dtype)
    b_cat = b_cat.reshape(1, n_pad).astype(jnp.float32)

    return GLMMultiHeadParams(
        w_cat=w_cat, b_cat=b_cat, hidden_size=H,
        num_pred=num_pred, num_pc=num_pc, predict_probs=predict_probs,
        n_dense=n_dense, n_prob=n_prob, n_prob_pad=n_prob_pad, n_pad=n_pad,
        split_outputs=split_outputs, compute_dtype=compute_dtype)


# --------------------------------------------------------------------------
# Forward
# --------------------------------------------------------------------------
def glm_multihead_forward(features, params: GLMMultiHeadParams, *,
                          out_dtype=None):
    """features: (B, S, H). Returns (x, probs) matching gLMMultiHead.forward."""
    B, S, H = features.shape
    assert H == params.hidden_size
    M = B * S

    f2d = features.reshape(M, H)
    if params.compute_dtype is not None:
        f2d = f2d.astype(params.compute_dtype)
    out_dtype = features.dtype if out_dtype is None else out_dtype

    in_isz = jnp.dtype(f2d.dtype).itemsize
    w_isz = jnp.dtype(params.w_cat.dtype).itemsize
    out_isz = jnp.dtype(out_dtype).itemsize
    n_pad, n_dense = params.n_pad, params.n_dense

    tile_budget, vmem_cap = _vmem_budget_and_cap()
    w_bytes = H * n_pad * w_isz
    bias_bytes = n_pad * 4

    # Large-H guard: if the resident weight would eat most of the budget,
    # switch to a K-tiled reduction instead of shrinking TILE_M into the dirt.
    use_ktiling = 2 * (w_bytes + bias_bytes) > tile_budget
    tile_k = None
    if use_ktiling:
        for cand in (2048, 1024, 512, 256, 128):
            if H % cand == 0:
                tile_k = cand
                break
        if tile_k is None:
            # TODO(synk): ragged-K tiling not implemented; keep weight resident.
            use_ktiling = False

    if not use_ktiling:
        # ---------------- resident-weight path (the common case) ------------
        fixed = 2 * (w_bytes + bias_bytes)   # conservative: allow double-buffer
        tile_m, vmem_need = _pick_tile_m(M, H, n_pad, in_isz, out_isz,
                                         fixed, tile_budget)
        grid = (pl.cdiv(M, tile_m),)
        vmem_limit = int(min(vmem_cap, max(32 * 2**20, vmem_need + 4 * 2**20)))
        cost = pl.CostEstimate(
            flops=2 * M * H * n_pad,
            transcendentals=0,
            bytes_accessed=(M * H * in_isz + w_bytes + bias_bytes
                            + M * n_pad * out_isz))

        def build(use_buffered):
            const_kw = dict(pipeline_mode=pl.Buffered(1)) if use_buffered else {}
            in_specs = [
                pl.BlockSpec((tile_m, H), lambda i: (i, 0)),               # stream
                pl.BlockSpec((H, n_pad), lambda i: (0, 0), **const_kw),    # resident
                pl.BlockSpec((1, n_pad), lambda i: (0, 0), **const_kw),    # resident
            ]
            if params.split_outputs:
                kernel = functools.partial(_glm_split_kernel, n_dense=n_dense)
                out_shape = (jax.ShapeDtypeStruct((M, n_dense), out_dtype),
                             jax.ShapeDtypeStruct((M, params.n_prob_pad),
                                                  out_dtype))
                out_specs = [
                    pl.BlockSpec((tile_m, n_dense), lambda i: (i, 0)),
                    pl.BlockSpec((tile_m, params.n_prob_pad), lambda i: (i, 0)),
                ]
            else:
                kernel = _glm_fused_kernel
                out_shape = jax.ShapeDtypeStruct((M, n_pad), out_dtype)
                out_specs = pl.BlockSpec((tile_m, n_pad), lambda i: (i, 0))
            return pl.pallas_call(
                kernel,
                out_shape=out_shape,
                grid_spec=pltpu.PrefetchScalarGridSpec(
                    num_scalar_prefetch=0, grid=grid,
                    in_specs=in_specs, out_specs=out_specs),
                compiler_params=pltpu.CompilerParams(
                    dimension_semantics=("parallel",),
                    vmem_limit_bytes=vmem_limit),
                cost_estimate=cost,
            )

        try:
            out = build(True)(f2d, params.w_cat, params.b_cat)
        except Exception:
            # Older Pallas without pipeline_mode / Buffered(1): default buffering.
            out = build(False)(f2d, params.w_cat, params.b_cat)

        if params.split_outputs:
            out_x, out_p = out
            x = out_x.reshape(B, S, params.num_pred, params.num_pc)
            probs = out_p[:, :params.num_pred].reshape(B, S, params.num_pred)
            return x, probs
    else:
        # ---------------- K-tiled path (very large hidden size) -------------
        tile_m, vmem_need = _pick_tile_m_ktiled(M, tile_k, n_pad, in_isz,
                                                w_isz, out_isz, tile_budget)
        grid = (pl.cdiv(M, tile_m), H // tile_k)
        vmem_limit = int(min(vmem_cap, max(32 * 2**20, vmem_need + 4 * 2**20)))
        cost = pl.CostEstimate(
            flops=2 * M * H * n_pad,
            transcendentals=0,
            bytes_accessed=(M * H * in_isz + w_bytes + bias_bytes
                            + M * n_pad * out_isz))
        out = pl.pallas_call(
            _glm_fused_ktiled_kernel,
            out_shape=jax.ShapeDtypeStruct((M, n_pad), out_dtype),
            grid_spec=pltpu.PrefetchScalarGridSpec(
                num_scalar_prefetch=0, grid=grid,
                in_specs=[
                    pl.BlockSpec((tile_m, tile_k), lambda i, k: (i, k)),
                    pl.BlockSpec((tile_k, n_pad), lambda i, k: (k, 0)),
                    pl.BlockSpec((1, n_pad), lambda i, k: (0, 0)),
                ],
                out_specs=pl.BlockSpec((tile_m, n_pad), lambda i, k: (i, 0)),
                scratch_shapes=[pltpu.VMEM((tile_m, n_pad), jnp.float32)]),
            compiler_params=pltpu.CompilerParams(
                dimension_semantics=("parallel", "arbitrary"),
                vmem_limit_bytes=vmem_limit),
            cost_estimate=cost,
        )(f2d, params.w_cat, params.b_cat)

    # Fused single-output layout: slice the two heads in the wrapper.
    x = out[:, :n_dense].reshape(B, S, params.num_pred, params.num_pc)
    if params.predict_probs:
        probs = out[:, n_dense:n_dense + params.num_pred].reshape(
            B, S, params.num_pred)
    else:
        probs = None
    return x, probs


# --------------------------------------------------------------------------
# Self-check
# --------------------------------------------------------------------------
if __name__ == "__main__":
    batch, seq = 2, 8
    hidden_size = 32
    num_pred = 4
    num_pc = 64
    predict_probs = True

    key = jax.random.PRNGKey(0)
    k_feat, k_wd, k_bd, k_wp, k_bp = jax.random.split(key, 5)

    features = jax.random.normal(k_feat, (batch, seq, hidden_size),
                                 dtype=jnp.float32)
    # torch Linear weight is (out, in); we store the transpose (in, out).
    w_dense = jax.random.normal(k_wd, (hidden_size, num_pred * num_pc),
                                dtype=jnp.float32) * 0.02
    b_dense = jax.random.normal(k_bd, (num_pred * num_pc,),
                                dtype=jnp.float32) * 0.02
    w_prob = jax.random.normal(k_wp, (hidden_size, num_pred),
                               dtype=jnp.float32) * 0.02
    b_prob = jax.random.normal(k_bp, (num_pred,), dtype=jnp.float32) * 0.02

    # Static weight fusion: done once, off the per-call critical path.
    params = prepare_glm_multihead_params(
        w_dense, b_dense, w_prob, b_prob,
        num_pred=num_pred, num_pc=num_pc, predict_probs=predict_probs,
        compute_dtype=None)   # set jnp.bfloat16 for production throughput

    x, probs = glm_multihead_forward(features, params)
    jax.block_until_ready(x)
    jax.block_until_ready(probs)

    # Reference check in plain JAX (same semantics as the torch forward).
    f2d = features.reshape(-1, hidden_size)
    x_ref = (f2d @ w_dense + b_dense).reshape(batch, seq, num_pred, num_pc)
    p_ref = (f2d @ w_prob + b_prob).reshape(batch, seq, num_pred)
    assert x.shape == (batch, seq, num_pred, num_pc)
    assert probs.shape == (batch, seq, num_pred)
    assert jnp.allclose(x, x_ref, atol=1e-4, rtol=1e-4)
    assert jnp.allclose(probs, p_ref, atol=1e-4, rtol=1e-4)

    print("KERNEL_OK")
</pallas_src>

<mosaic_0001>
module attributes {stable_mosaic.version = 11 : i64} {
  func.func @_glm_split_kernel(%arg0: i32, %arg1: memref<16x32xf32, #tpu.memory_space<vmem>>, %arg2: memref<32x384xf32, #tpu.memory_space<vmem>>, %arg3: memref<1x384xf32, #tpu.memory_space<vmem>>, %arg4: memref<16x256xf32, #tpu.memory_space<vmem>>, %arg5: memref<16x128xf32, #tpu.memory_space<vmem>>) attributes {dimension_semantics = [#tpu.dimension_semantics<parallel>], iteration_bounds = array<i64: 1>, scalar_prefetch = 0 : i64, scratch_operands = 0 : i64, tpu.core_type = #tpu.core_type<tc>, window_params = [{transform_indices = @transform_0, window_bounds = array<i64: 16, 32>}, {pipeline_mode = #tpu.pipeline_mode<synchronous>, transform_indices = @transform_1, window_bounds = array<i64: 32, 384>}, {pipeline_mode = #tpu.pipeline_mode<synchronous>, transform_indices = @transform_2, window_bounds = array<i64: 1, 384>}, {transform_indices = @transform_3, window_bounds = array<i64: 16, 256>}, {transform_indices = @transform_4, window_bounds = array<i64: 16, 128>}]} {
    %c0 = arith.constant 0 : index
    %c0_0 = arith.constant 0 : index
    %0 = vector.load %arg1[%c0, %c0_0] : memref<16x32xf32, #tpu.memory_space<vmem>>, vector<16x32xf32>
    %c0_1 = arith.constant 0 : index
    %c0_2 = arith.constant 0 : index
    %1 = vector.load %arg2[%c0_1, %c0_2] : memref<32x384xf32, #tpu.memory_space<vmem>>, vector<32x384xf32>
    %cst = arith.constant dense<0.000000e+00> : vector<16x384xf32>
    %2 = tpu.matmul %0, %1, %cst {dimension_numbers = #tpu.dot_dimension_numbers<[1], [0], [0], [1], [0, 0, 1, 1], [], []>} : vector<16x32xf32>, vector<32x384xf32>, vector<16x384xf32> -> vector<16x384xf32>
    %c0_3 = arith.constant 0 : index
    %c0_4 = arith.constant 0 : index
    %3 = vector.load %arg3[%c0_3, %c0_4] : memref<1x384xf32, #tpu.memory_space<vmem>>, vector<1x384xf32>
    %4 = vector.broadcast %3 : vector<1x384xf32> to vector<16x384xf32>
    %5 = arith.addf %2, %4 : vector<16x384xf32>
    %6 = vector.extract_strided_slice %5 {offsets = [0, 0], sizes = [16, 256], strides = [1, 1]} : vector<16x384xf32> to vector<16x256xf32>
    %c0_5 = arith.constant 0 : index
    %c0_6 = arith.constant 0 : index
    %7 = vector.load %arg4[%c0_5, %c0_6] : memref<16x256xf32, #tpu.memory_space<vmem>>, vector<16x256xf32>
    tpu.vector_store %arg4[%c0_5, %c0_6], %6 {strides = array<i32>} : memref<16x256xf32, #tpu.memory_space<vmem>>, vector<16x256xf32>,
    %8 = vector.extract_strided_slice %5 {offsets = [0, 256], sizes = [16, 128], strides = [1, 1]} : vector<16x384xf32> to vector<16x128xf32>
    %c0_7 = arith.constant 0 : index
    %c0_8 = arith.constant 0 : index
    %9 = vector.load %arg5[%c0_7, %c0_8] : memref<16x128xf32, #tpu.memory_space<vmem>>, vector<16x128xf32>
    tpu.vector_store %arg5[%c0_7, %c0_8], %8 {strides = array<i32>} : memref<16x128xf32, #tpu.memory_space<vmem>>, vector<16x128xf32>,
    return
  }
  func.func @transform_0(%arg0: i32) -> (i32, i32) {
    %c0_i32 = arith.constant 0 : i32
    %c0_i32_0 = arith.constant 0 : i32
    return %arg0, %c0_i32 : i32, i32
  }
  func.func @transform_1(%arg0: i32) -> (i32, i32) {
    %c0_i32 = arith.constant 0 : i32
    %c0_i32_0 = arith.constant 0 : i32
    %c0_i32_1 = arith.constant 0 : i32
    return %c0_i32, %c0_i32_0 : i32, i32
  }
  func.func @transform_2(%arg0: i32) -> (i32, i32) {
    %c0_i32 = arith.constant 0 : i32
    %c0_i32_0 = arith.constant 0 : i32
    %c0_i32_1 = arith.constant 0 : i32
    return %c0_i32, %c0_i32_0 : i32, i32
  }
  func.func @transform_3(%arg0: i32) -> (i32, i32) {
    %c0_i32 = arith.constant 0 : i32
    %c0_i32_0 = arith.constant 0 : i32
    return %arg0, %c0_i32 : i32, i32
  }
  func.func @transform_4(%arg0: i32) -> (i32, i32) {
    %c0_i32 = arith.constant 0 : i32
    %c0_i32_0 = arith.constant 0 : i32
    return %arg0, %c0_i32 : i32, i32
  }
}

module attributes {stable_mosaic.version = 11 : i64} {
  func.func @_glm_split_kernel(%arg0: i32, %arg1: memref<16x32xf32, #tpu.memory_space<vmem>>, %arg2: memref<32x384xf32, #tpu.memory_space<vmem>>, %arg3: memref<1x384xf32, #tpu.memory_space<vmem>>, %arg4: memref<16x256xf32, #tpu.memory_space<vmem>>, %arg5: memref<16x128xf32, #tpu.memory_space<vmem>>) attributes {dimension_semantics = [#tpu.dimension_semantics<parallel>], iteration_bounds = array<i64: 1>, scalar_prefetch = 0 : i64, scratch_operands = 0 : i64, tpu.core_type = #tpu.core_type<tc>, window_params = [{transform_indices = @transform_0, window_bounds = array<i64: 16, 32>}, {pipeline_mode = #tpu.pipeline_mode<synchronous>, transform_indices = @transform_1, window_bounds = array<i64: 32, 384>}, {pipeline_mode = #tpu.pipeline_mode<synchronous>, transform_indices = @transform_2, window_bounds = array<i64: 1, 384>}, {transform_indices = @transform_3, window_bounds = array<i64: 16, 256>}, {transform_indices = @transform_4, window_bounds = array<i64: 16, 128>}]} {
    %c0 = arith.constant 0 : index
    %c0_0 = arith.constant 0 : index
    %0 = vector.load %arg1[%c0, %c0_0] : memref<16x32xf32, #tpu.memory_space<vmem>>, vector<16x32xf32>
    %c0_1 = arith.constant 0 : index
    %c0_2 = arith.constant 0 : index
    %1 = vector.load %arg2[%c0_1, %c0_2] : memref<32x384xf32, #tpu.memory_space<vmem>>, vector<32x384xf32>
    %cst = arith.constant dense<0.000000e+00> : vector<16x384xf32>
    %2 = tpu.matmul %0, %1, %cst {dimension_numbers = #tpu.dot_dimension_numbers<[1], [0], [0], [1], [0, 0, 1, 1], [], []>} : vector<16x32xf32>, vector<32x384xf32>, vector<16x384xf32> -> vector<16x384xf32>
    %c0_3 = arith.constant 0 : index
    %c0_4 = arith.constant 0 : index
    %3 = vector.load %arg3[%c0_3, %c0_4] : memref<1x384xf32, #tpu.memory_space<vmem>>, vector<1x384xf32>
    %4 = vector.broadcast %3 : vector<1x384xf32> to vector<16x384xf32>
    %5 = arith.addf %2, %4 : vector<16x384xf32>
    %6 = vector.extract_strided_slice %5 {offsets = [0, 0], sizes = [16, 256], strides = [1, 1]} : vector<16x384xf32> to vector<16x256xf32>
    %c0_5 = arith.constant 0 : index
    %c0_6 = arith.constant 0 : index
    %7 = vector.load %arg4[%c0_5, %c0_6] : memref<16x256xf32, #tpu.memory_space<vmem>>, vector<16x256xf32>
    tpu.vector_store %arg4[%c0_5, %c0_6], %6 {strides = array<i32>} : memref<16x256xf32, #tpu.memory_space<vmem>>, vector<16x256xf32>,
    %8 = vector.extract_strided_slice %5 {offsets = [0, 256], sizes = [16, 128], strides = [1, 1]} : vector<16x384xf32> to vector<16x128xf32>
    %c0_7 = arith.constant 0 : index
    %c0_8 = arith.constant 0 : index
    %9 = vector.load %arg5[%c0_7, %c0_8] : memref<16x128xf32, #tpu.memory_space<vmem>>, vector<16x128xf32>
    tpu.vector_store %arg5[%c0_7, %c0_8], %8 {strides = array<i32>} : memref<16x128xf32, #tpu.memory_space<vmem>>, vector<16x128xf32>,
    return
  }
  func.func @transform_0(%arg0: i32) -> (i32, i32) {
    %c0_i32 = arith.constant 0 : i32
    %c0_i32_0 = arith.constant 0 : i32
    return %arg0, %c0_i32 : i32, i32
  }
  func.func @transform_1(%arg0: i32) -> (i32, i32) {
    %c0_i32 = arith.constant 0 : i32
    %c0_i32_0 = arith.constant 0 : i32
    %c0_i32_1 = arith.constant 0 : i32
    return %c0_i32, %c0_i32_0 : i32, i32
  }
  func.func @transform_2(%arg0: i32) -> (i32, i32) {
    %c0_i32 = arith.constant 0 : i32
    %c0_i32_0 = arith.constant 0 : i32
    %c0_i32_1 = arith.constant 0 : i32
    return %c0_i32, %c0_i32_0 : i32, i32
  }
  func.func @transform_3(%arg0: i32) -> (i32, i32) {
    %c0_i32 = arith.constant 0 : i32
    %c0_i32_0 = arith.constant 0 : i32
    return %arg0, %c0_i32 : i32, i32
  }
  func.func @transform_4(%arg0: i32) -> (i32, i32) {
    %c0_i32 = arith.constant 0 : i32
    %c0_i32_0 = arith.constant 0 : i32
    return %arg0, %c0_i32 : i32, i32
  }
}

</mosaic_0001>

<llo_original>
// kernel: tpu_custom_call.1
$region0: #{tpu_custom_call.1}
  #allocation0 [shape = 'u32[]', space=smem, size = 0x4, offset = 0x4, fixed_abs, tag = 'smem constant byte address 0x4 - core index']
  #allocation1 [shape = 'u32[144,128]{1,0:T(1,128)}', space=vmem, size = 0x12000, scoped, tag = 'internal scratch']
  %s0 = inlined_call_operand.hbm [shape: f32[16,32], index: 0, kind: input, shape index: {}]
  %s1 = inlined_call_operand.hbm [shape: f32[32,384], index: 1, kind: input, shape index: {}]
  %s2 = inlined_call_operand.vmem [shape: f32[1,384], index: 2, kind: input, shape index: {}]
  %s3 = inlined_call_operand.hbm [shape: f32[16,256], index: 3, kind: output, shape index: {0}]
  %s4 = inlined_call_operand.hbm [shape: f32[16,128], index: 4, kind: output, shape index: {1}]
  %5 = xla_tuple %s3, %s4
  %s6 = sld [smem:[#allocation0]]
  $region38: #{tpu_custom_call.1} parent=0
    _
  %s8 = ssub.s32 1, %s6
  %s9 = scalar_select 0, %s8, %s6
  $region1: #{tpu_custom_call.1} parent=0
    #allocation2 [shape = 'u8[8192]{0}', space=vmem, size = 0x2000, scoped, tag = 'input window, operand 0, single buffered']
    #allocation3 [shape = 's32[1]{0}', space=sflag, size = 0x4, scoped, tag = 'scoped memory for tpu_custom_call.1']
    #allocation4 [shape = 's32[1]{0}', space=sflag, size = 0x4, scoped, tag = 'scoped memory for tpu_custom_call.1']
    #allocation5 [shape = 'u8[49152]{0}', space=vmem, size = 0xc000, scoped, tag = 'input window, operand 1, single buffered']
    #allocation6 [shape = 's32[1]{0}', space=sflag, size = 0x4, scoped, tag = 'scoped memory for tpu_custom_call.1']
    #allocation7 [shape = 'u8[16384]{0}', space=vmem, size = 0x4000, scoped, tag = 'output window, operand 0, single buffered']
    #allocation8 [shape = 'u8[8192]{0}', space=vmem, size = 0x2000, scoped, tag = 'output window, operand 1, single buffered']
    #allocation9 [shape = 's32[1]{0}', space=sflag, size = 0x4, scoped, tag = 'scoped memory for tpu_custom_call.1']
    %10 = vsyncpa [#allocation3], 0
    %11 = vsyncpa [#allocation6], 0
    %12 = vsyncpa [#allocation4], 0
    %13 = vsyncpa [#allocation9], 0
    // Predicated region
    $region2: #{tpu_custom_call.1} parent=1 // pred_check
      _
    $region3: #{tpu_custom_call.1} parent=1 // pred_check_branch
      %15 = sbr.rel (0) target = $region5
    $region4: #{tpu_custom_call.1} parent=1 // pred_region
      %s17 = ssub.s32 256, 256
      %18 = vsyncadd [#allocation3], %s17
      %s19 = sshll.u32 [#allocation2], 4
      %s20 = int_to_ptr.vmem [resolvable:$true] %s19
      %25 = dma.hbm_to_vmem [thread:$0]  %s0, 256, %s20, [#allocation3], 128, 128, 8
    $region5: #{tpu_custom_call.1} parent=1 // pred_fallthru
      _
    // Predicated region
    $region6: #{tpu_custom_call.1} parent=1 // pred_check
      _
    $region7: #{tpu_custom_call.1} parent=1 // pred_check_branch
      %27 = sbr.rel (0) target = $region9
    $region8: #{tpu_custom_call.1} parent=1 // pred_region
      %s29 = ssub.s32 1536, 1536
      %30 = vsyncadd [#allocation6], %s29
      %s31 = sshll.u32 [#allocation5], 4
      %s32 = int_to_ptr.vmem [resolvable:$true] %s31
      %37 = dma.hbm_to_vmem [thread:$0]  %s1, 1536, %s32, [#allocation6], 384, 384, 24
    $region9: #{tpu_custom_call.1} parent=1 // pred_fallthru
      _
    // Predicated region
    $region10: #{tpu_custom_call.1} parent=1 // pred_check
      _
    $region11: #{tpu_custom_call.1} parent=1 // pred_check_branch
      %39 = sbr.rel (0) target = $region13
    $region12: #{tpu_custom_call.1} parent=1 // pred_region
      _
    $region13: #{tpu_custom_call.1} parent=1 // pred_fallthru
      _
    // Predicated region
    $region14: #{tpu_custom_call.1} parent=1 // pred_check
      _
    $region15: #{tpu_custom_call.1} parent=1 // pred_check_branch
      %41 = sbr.rel (0) target = $region17
    $region16: #{tpu_custom_call.1} parent=1 // pred_region
      %42 = dma.done [#allocation3], 256
    $region17: #{tpu_custom_call.1} parent=1 // pred_fallthru
      _
    // Predicated region
    $region18: #{tpu_custom_call.1} parent=1 // pred_check
      _
    $region19: #{tpu_custom_call.1} parent=1 // pred_check_branch
      %44 = sbr.rel (0) target = $region21
    $region20: #{tpu_custom_call.1} parent=1 // pred_region
      %45 = dma.done [#allocation6], 1536
    $region21: #{tpu_custom_call.1} parent=1 // pred_fallthru
      _
    %v46 = vld [vmem:[#allocation2] sm:$0xff]
    %v47 = vld [vmem:[#allocation2 + $0x8] sm:$0xff]
    %v48 = vld [vmem:[#allocation5] sm:$0xff]
    %v49 = vld [vmem:[#allocation5 + $0x8] sm:$0xff]
    %v50 = vld [vmem:[#allocation5 + $0x10] sm:$0xff]
    %v51 = vld [vmem:[#allocation5 + $0x18] sm:$0xff]
    %v52 = vld [vmem:[#allocation5 + $0x20] sm:$0xff]
    %v53 = vld [vmem:[#allocation5 + $0x28] sm:$0xff]
    %v54 = vld [vmem:[#allocation5 + $0x30] sm:$0xff]
    %v55 = vld [vmem:[#allocation5 + $0x38] sm:$0xff]
    %v56 = vld [vmem:[#allocation5 + $0x40] sm:$0xff]
    %v57 = vld [vmem:[#allocation5 + $0x48] sm:$0xff]
    %v58 = vld [vmem:[#allocation5 + $0x50] sm:$0xff]
    %v59 = vld [vmem:[#allocation5 + $0x58] sm:$0xff]
    %v60 = vld [vmem:[%s2] sm:$0x7]
    %v62 = vlaneseq
    %v63 = vshrl.u32 %v62, 7
    %v64 = vsub.s32 0, %v63
    %v65 = vrot.slane %v60, %v64
    %v66 = vlaneseq
    %v67 = vshrl.u32 %v66, 7
    %v68 = vsub.s32 1, %v67
    %v69 = vrot.slane %v60, %v68
    %v70 = vlaneseq
    %v71 = vshrl.u32 %v70, 7
    %v72 = vsub.s32 2, %v71
    %v73 = vrot.slane %v60, %v72
    %vm77 = vcmask 261120
    %v79 = vsel %vm77, %v46, 0
    %v82 = vsel %vm77, %v47, 0
    %84 = vmatprep.subr.mxu0 %v49
    %85 = vmatpush1.msra.mxu0 %v48
    %86 = vmatprep.subr.mxu0 %v52
    %87 = vmatpush1.msra.mxu0 %v51
    %88 = vmatprep.subr.mxu0 %v55
    %89 = vmatpush1.msra.mxu0 %v54
    %90 = vmatprep.subr.mxu0 %v58
    %91 = vmatpush1.msra.mxu0 %v57
    %92 = vmatprep.subr.mxu0 0.0
    %93 = vmatpush1.msra.mxu0 0.0
    %94 = vmatprep.subr.mxu0 0.0
    %95 = vmatpush1.msra.mxu0 0.0
    %96 = vmatprep.subr.mxu0 0.0
    %97 = vmatpush1.msra.mxu0 0.0
    %98 = vmatprep.subr.mxu0 0.0
    %99 = vmatpush1.msra.mxu0 0.0
    %100 = vmatprep.subr.mxu0 0.0
    %101 = vmatpush1.msra.mxu0 0.0
    %102 = vmatprep.subr.mxu0 0.0
    %103 = vmatpush1.msra.mxu0 0.0
    %104 = vmatprep.subr.mxu0 0.0
    %105 = vmatpush1.msra.mxu0 0.0
    %106 = vmatprep.subr.mxu0 0.0
    %107 = vmatpush1.msra.mxu0 0.0
    %108 = vmatprep.subr.mxu0 0.0
    %109 = vmatpush1.msra.mxu0 0.0
    %110 = vmatprep.subr.mxu0 0.0
    %111 = vmatpush1.msra.mxu0 0.0
    %112 = vmatprep.subr.mxu0 0.0
    %113 = vmatpush1.msra.mxu0 0.0
    %114 = vmatprep.subr.mxu0 0.0
    %115 = vmatpush1.msra.mxu0 0.0
    %116 = vmatprep.subr.mxu0 0.0
    %117 = vmatpush1.msra.mxu0 0.0
    %118 = vmatprep.subr.mxu0 0.0
    %119 = vmatpush1.msra.mxu0 0.0
    %120 = vmatprep.subr.mxu0 0.0
    %121 = vmatpush1.msra.mxu0 0.0
    %122 = vmatprep.subr.mxu0 0.0
    %123 = vmatpush1.msra.mxu0 0.0
    %124 = vmatprep.subr.mxu0 0.0
    %125 = vmatpush1.msra.mxu0 0.0
    %126 = vmatprep.subr.mxu0 0.0
    %127 = vmatpush1.msra.mxu0 0.0
    %128 = vmatprep.subr.mxu0 0.0
    %129 = vmatpush1.msra.mxu0 0.0
    %130 = vmatprep.subr.mxu0 0.0
    %131 = vmatpush1.msra.mxu0 0.0
    %132 = vmatprep.subr.mxu0 0.0
    %133 = vmatpush1.msra.mxu0 0.0
    %134 = vmatprep.subr.mxu0 0.0
    %135 = vmatpush1.msra.mxu0 0.0
    %136 = vmatprep.subr.mxu0 0.0
    %137 = vmatpush1.msra.mxu0 0.0
    %138 = vmatprep.subr.mxu0 0.0
    %139 = vmatpush1.msra.mxu0 0.0
    %140 = vmatprep.subr.mxu0 0.0
    %141 = vmatpush1.msra.mxu0 0.0
    %142 = vmatprep.subr.mxu0 0.0
    %143 = vmatpush1.msra.mxu0 0.0
    %144 = vmatprep.subr.mxu0 0.0
    %145 = vmatpush1.msra.mxu0 0.0
    %146 = vmatprep.subr.mxu0 0.0
    %147 = vmatpush1.msra.mxu0 0.0
    %148 = vmatprep.mubr.f32.mxu0 0.0
    %149 = vmatmul.mubr.f32.gmra.mrb[0].mxu0 %v79
    %v150 = vpop.f32.mrb[0].mxu0
    %v151 = vadd.f32 %v65, %v150
    %v152 = vpop.f32.mrb[0].mxu0
    %v153 = vadd.f32 %v69, %v152
    %154 = vmatprep.mubr.f32.mxu0 0.0
    %155 = vmatmul.mubr.f32.gmra.mrb[0].mxu0 %v82
    %v156 = vpop.f32.mrb[0].mxu0
    %v157 = vadd.f32 %v65, %v156
    %v158 = vpop.f32.mrb[0].mxu0
    %v159 = vadd.f32 %v69, %v158
    %160 = vdwg.mxu0
    %161 = vmatprep.subr.mxu0 0.0
    %162 = vmatpush1.msra.mxu0 %v50
    %163 = vmatprep.subr.mxu0 0.0
    %164 = vmatpush1.msra.mxu0 %v53
    %165 = vmatprep.subr.mxu0 0.0
    %166 = vmatpush1.msra.mxu0 %v56
    %167 = vmatprep.subr.mxu0 0.0
    %168 = vmatpush1.msra.mxu0 %v59
    %169 = vmatprep.subr.mxu0 0.0
    %170 = vmatpush1.msra.mxu0 0.0
    %171 = vmatprep.subr.mxu0 0.0
    %172 = vmatpush1.msra.mxu0 0.0
    %173 = vmatprep.subr.mxu0 0.0
    %174 = vmatpush1.msra.mxu0 0.0
    %175 = vmatprep.subr.mxu0 0.0
    %176 = vmatpush1.msra.mxu0 0.0
    %177 = vmatprep.subr.mxu0 0.0
    %178 = vmatpush1.msra.mxu0 0.0
    %179 = vmatprep.subr.mxu0 0.0
    %180 = vmatpush1.msra.mxu0 0.0
    %181 = vmatprep.subr.mxu0 0.0
    %182 = vmatpush1.msra.mxu0 0.0
    %183 = vmatprep.subr.mxu0 0.0
    %184 = vmatpush1.msra.mxu0 0.0
    %185 = vmatprep.subr.mxu0 0.0
    %186 = vmatpush1.msra.mxu0 0.0
    %187 = vmatprep.subr.mxu0 0.0
    %188 = vmatpush1.msra.mxu0 0.0
    %189 = vmatprep.subr.mxu0 0.0
    %190 = vmatpush1.msra.mxu0 0.0
    %191 = vmatprep.subr.mxu0 0.0
    %192 = vmatpush1.msra.mxu0 0.0
    %193 = vmatprep.subr.mxu0 0.0
    %194 = vmatpush1.msra.mxu0 0.0
    %195 = vmatprep.subr.mxu0 0.0
    %196 = vmatpush1.msra.mxu0 0.0
    %197 = vmatprep.subr.mxu0 0.0
    %198 = vmatpush1.msra.mxu0 0.0
    %199 = vmatprep.subr.mxu0 0.0
    %200 = vmatpush1.msra.mxu0 0.0
    %201 = vmatprep.subr.mxu0 0.0
    %202 = vmatpush1.msra.mxu0 0.0
    %203 = vmatprep.subr.mxu0 0.0
    %204 = vmatpush1.msra.mxu0 0.0
    %205 = vmatprep.subr.mxu0 0.0
    %206 = vmatpush1.msra.mxu0 0.0
    %207 = vmatprep.subr.mxu0 0.0
    %208 = vmatpush1.msra.mxu0 0.0
    %209 = vmatprep.subr.mxu0 0.0
    %210 = vmatpush1.msra.mxu0 0.0
    %211 = vmatprep.subr.mxu0 0.0
    %212 = vmatpush1.msra.mxu0 0.0
    %213 = vmatprep.subr.mxu0 0.0
    %214 = vmatpush1.msra.mxu0 0.0
    %215 = vmatprep.subr.mxu0 0.0
    %216 = vmatpush1.msra.mxu0 0.0
    %217 = vmatprep.subr.mxu0 0.0
    %218 = vmatpush1.msra.mxu0 0.0
    %219 = vmatprep.subr.mxu0 0.0
    %220 = vmatpush1.msra.mxu0 0.0
    %221 = vmatprep.subr.mxu0 0.0
    %222 = vmatpush1.msra.mxu0 0.0
    %223 = vmatprep.subr.mxu0 0.0
    %224 = vmatpush1.msra.mxu0 0.0
    %225 = vmatprep.mubr.f32.mxu0 0.0
    %226 = vmatmul.mubr.f32.gmra.mrb[0].mxu0 %v79
    %v227 = vpop.f32.mrb[0].mxu0
    %v228 = vadd.f32 %v73, %v227
    %v229 = vpop.f32.mrb[0].mxu0
    %230 = vmatprep.mubr.f32.mxu0 0.0
    %231 = vmatmul.mubr.f32.gmra.mrb[0].mxu0 %v82
    %v232 = vpop.f32.mrb[0].mxu0
    %v233 = vadd.f32 %v73, %v232
    %v234 = vpop.f32.mrb[0].mxu0
    %235 = vdwg.mxu0
    %236 = vst [vmem:[#allocation7] sm:$0xff] %v151
    %237 = vst [vmem:[#allocation7 + $0x8] sm:$0xff] %v153
    %238 = vst [vmem:[#allocation7 + $0x10] sm:$0xff] %v157
    %239 = vst [vmem:[#allocation7 + $0x18] sm:$0xff] %v159
    %240 = vst [vmem:[#allocation8] sm:$0xff] %v228
    %241 = vst [vmem:[#allocation8 + $0x8] sm:$0xff] %v233
    // Predicated region
    $region22: #{tpu_custom_call.1} parent=1 // pred_check
      _
    $region23: #{tpu_custom_call.1} parent=1 // pred_check_branch
      %243 = sbr.rel (0) target = $region25
    $region24: #{tpu_custom_call.1} parent=1 // pred_region
      %s245 = ssub.s32 512, 512
      %246 = vsyncadd [#allocation4], %s245
      %s247 = sshll.u32 [#allocation7], 4
      %s248 = int_to_ptr.vmem [resolvable:$true] %s247
      %253 = dma.vmem_to_hbm [thread:$0]  %s248, 512, %s3, [#allocation4], 256, 256, 16
    $region25: #{tpu_custom_call.1} parent=1 // pred_fallthru
      _
    // Predicated region
    $region26: #{tpu_custom_call.1} parent=1 // pred_check
      _
    $region27: #{tpu_custom_call.1} parent=1 // pred_check_branch
      %255 = sbr.rel (0) target = $region29
    $region28: #{tpu_custom_call.1} parent=1 // pred_region
      %s257 = ssub.s32 256, 256
      %258 = vsyncadd [#allocation9], %s257
      %s259 = sshll.u32 [#allocation8], 4
      %s260 = int_to_ptr.vmem [resolvable:$true] %s259
      %265 = dma.vmem_to_hbm [thread:$0]  %s260, 256, %s4, [#allocation9], 128, 128, 8
    $region29: #{tpu_custom_call.1} parent=1 // pred_fallthru
      _
    // Predicated region
    $region30: #{tpu_custom_call.1} parent=1 // pred_check
      _
    $region31: #{tpu_custom_call.1} parent=1 // pred_check_branch
      %267 = sbr.rel (0) target = $region33
    $region32: #{tpu_custom_call.1} parent=1 // pred_region
      %268 = dma.done [#allocation4], 512
    $region33: #{tpu_custom_call.1} parent=1 // pred_fallthru
      _
    // Predicated region
    $region34: #{tpu_custom_call.1} parent=1 // pred_check
      _
    $region35: #{tpu_custom_call.1} parent=1 // pred_check_branch
      %270 = sbr.rel (0) target = $region37
    $region36: #{tpu_custom_call.1} parent=1 // pred_region
      %271 = dma.done [#allocation9], 256
    $region37: #{tpu_custom_call.1} parent=1 // pred_fallthru
      _
    %272 = vsyncpa [#allocation3], 1
    %273 = vsyncpa [#allocation6], 1
    %274 = vsyncpa [#allocation4], 1
    %275 = vsyncpa [#allocation9], 1

// kernel: tpu_custom_call.1
$region0: #{tpu_custom_call.1}
  #allocation0 [shape = 'u32[]', space=smem, size = 0x4, offset = 0x4, fixed_abs, tag = 'smem constant byte address 0x4 - core index']
  #allocation1 [shape = 'u32[144,128]{1,0:T(1,128)}', space=vmem, size = 0x12000, scoped, tag = 'internal scratch']
  %s0 = inlined_call_operand.hbm [shape: f32[16,32], index: 0, kind: input, shape index: {}]
  %s1 = inlined_call_operand.hbm [shape: f32[32,384], index: 1, kind: input, shape index: {}]
  %s2 = inlined_call_operand.vmem [shape: f32[1,384], index: 2, kind: input, shape index: {}]
  %s3 = inlined_call_operand.hbm [shape: f32[16,256], index: 3, kind: output, shape index: {0}]
  %s4 = inlined_call_operand.hbm [shape: f32[16,128], index: 4, kind: output, shape index: {1}]
  %5 = xla_tuple %s3, %s4
  %s6 = sld [smem:[#allocation0]]
  $region38: #{tpu_custom_call.1} parent=0
    _
  %s8 = ssub.s32 1, %s6
  %s9 = scalar_select 0, %s8, %s6
  $region1: #{tpu_custom_call.1} parent=0
    #allocation2 [shape = 'u8[8192]{0}', space=vmem, size = 0x2000, scoped, tag = 'input window, operand 0, single buffered']
    #allocation3 [shape = 's32[1]{0}', space=sflag, size = 0x4, scoped, tag = 'scoped memory for tpu_custom_call.1']
    #allocation4 [shape = 's32[1]{0}', space=sflag, size = 0x4, scoped, tag = 'scoped memory for tpu_custom_call.1']
    #allocation5 [shape = 'u8[49152]{0}', space=vmem, size = 0xc000, scoped, tag = 'input window, operand 1, single buffered']
    #allocation6 [shape = 's32[1]{0}', space=sflag, size = 0x4, scoped, tag = 'scoped memory for tpu_custom_call.1']
    #allocation7 [shape = 'u8[16384]{0}', space=vmem, size = 0x4000, scoped, tag = 'output window, operand 0, single buffered']
    #allocation8 [shape = 'u8[8192]{0}', space=vmem, size = 0x2000, scoped, tag = 'output window, operand 1, single buffered']
    #allocation9 [shape = 's32[1]{0}', space=sflag, size = 0x4, scoped, tag = 'scoped memory for tpu_custom_call.1']
    %10 = vsyncpa [#allocation3], 0
    %11 = vsyncpa [#allocation6], 0
    %12 = vsyncpa [#allocation4], 0
    %13 = vsyncpa [#allocation9], 0
    // Predicated region
    $region2: #{tpu_custom_call.1} parent=1 // pred_check
      _
    $region3: #{tpu_custom_call.1} parent=1 // pred_check_branch
      %15 = sbr.rel (0) target = $region5
    $region4: #{tpu_custom_call.1} parent=1 // pred_region
      %s17 = ssub.s32 256, 256
      %18 = vsyncadd [#allocation3], %s17
      %s19 = sshll.u32 [#allocation2], 4
      %s20 = int_to_ptr.vmem [resolvable:$true] %s19
      %25 = dma.hbm_to_vmem [thread:$0]  %s0, 256, %s20, [#allocation3], 128, 128, 8
    $region5: #{tpu_custom_call.1} parent=1 // pred_fallthru
      _
    // Predicated region
    $region6: #{tpu_custom_call.1} parent=1 // pred_check
      _
    $region7: #{tpu_custom_call.1} parent=1 // pred_check_branch
      %27 = sbr.rel (0) target = $region9
    $region8: #{tpu_custom_call.1} parent=1 // pred_region
      %s29 = ssub.s32 1536, 1536
      %30 = vsyncadd [#allocation6], %s29
      %s31 = sshll.u32 [#allocation5], 4
      %s32 = int_to_ptr.vmem [resolvable:$true] %s31
      %37 = dma.hbm_to_vmem [thread:$0]  %s1, 1536, %s32, [#allocation6], 384, 384, 24
    $region9: #{tpu_custom_call.1} parent=1 // pred_fallthru
      _
    // Predicated region
    $region10: #{tpu_custom_call.1} parent=1 // pred_check
      _
    $region11: #{tpu_custom_call.1} parent=1 // pred_check_branch
      %39 = sbr.rel (0) target = $region13
    $region12: #{tpu_custom_call.1} parent=1 // pred_region
      _
    $region13: #{tpu_custom_call.1} parent=1 // pred_fallthru
      _
    // Predicated region
    $region14: #{tpu_custom_call.1} parent=1 // pred_check
      _
    $region15: #{tpu_custom_call.1} parent=1 // pred_check_branch
      %41 = sbr.rel (0) target = $region17
    $region16: #{tpu_custom_call.1} parent=1 // pred_region
      %42 = dma.done [#allocation3], 256
    $region17: #{tpu_custom_call.1} parent=1 // pred_fallthru
      _
    // Predicated region
    $region18: #{tpu_custom_call.1} parent=1 // pred_check
      _
    $region19: #{tpu_custom_call.1} parent=1 // pred_check_branch
      %44 = sbr.rel (0) target = $region21
    $region20: #{tpu_custom_call.1} parent=1 // pred_region
      %45 = dma.done [#allocation6], 1536
    $region21: #{tpu_custom_call.1} parent=1 // pred_fallthru
      _
    %v46 = vld [vmem:[#allocation2] sm:$0xff]
    %v47 = vld [vmem:[#allocation2 + $0x8] sm:$0xff]
    %v48 = vld [vmem:[#allocation5] sm:$0xff]
    %v49 = vld [vmem:[#allocation5 + $0x8] sm:$0xff]
    %v50 = vld [vmem:[#allocation5 + $0x10] sm:$0xff]
    %v51 = vld [vmem:[#allocation5 + $0x18] sm:$0xff]
    %v52 = vld [vmem:[#allocation5 + $0x20] sm:$0xff]
    %v53 = vld [vmem:[#allocation5 + $0x28] sm:$0xff]
    %v54 = vld [vmem:[#allocation5 + $0x30] sm:$0xff]
    %v55 = vld [vmem:[#allocation5 + $0x38] sm:$0xff]
    %v56 = vld [vmem:[#allocation5 + $0x40] sm:$0xff]
    %v57 = vld [vmem:[#allocation5 + $0x48] sm:$0xff]
    %v58 = vld [vmem:[#allocation5 + $0x50] sm:$0xff]
    %v59 = vld [vmem:[#allocation5 + $0x58] sm:$0xff]
    %v60 = vld [vmem:[%s2] sm:$0x7]
    %v62 = vlaneseq
    %v63 = vshrl.u32 %v62, 7
    %v64 = vsub.s32 0, %v63
    %v65 = vrot.slane %v60, %v64
    %v66 = vlaneseq
    %v67 = vshrl.u32 %v66, 7
    %v68 = vsub.s32 1, %v67
    %v69 = vrot.slane %v60, %v68
    %v70 = vlaneseq
    %v71 = vshrl.u32 %v70, 7
    %v72 = vsub.s32 2, %v71
    %v73 = vrot.slane %v60, %v72
    %vm77 = vcmask 261120
    %v79 = vsel %vm77, %v46, 0
    %v82 = vsel %vm77, %v47, 0
    %84 = vmatprep.subr.mxu0 %v49
    %85 = vmatpush1.msra.mxu0 %v48
    %86 = vmatprep.subr.mxu0 %v52
    %87 = vmatpush1.msra.mxu0 %v51
    %88 = vmatprep.subr.mxu0 %v55
    %89 = vmatpush1.msra.mxu0 %v54
    %90 = vmatprep.subr.mxu0 %v58
    %91 = vmatpush1.msra.mxu0 %v57
    %92 = vmatprep.subr.mxu0 0.0
    %93 = vmatpush1.msra.mxu0 0.0
    %94 = vmatprep.subr.mxu0 0.0
    %95 = vmatpush1.msra.mxu0 0.0
    %96 = vmatprep.subr.mxu0 0.0
    %97 = vmatpush1.msra.mxu0 0.0
    %98 = vmatprep.subr.mxu0 0.0
    %99 = vmatpush1.msra.mxu0 0.0
    %100 = vmatprep.subr.mxu0 0.0
    %101 = vmatpush1.msra.mxu0 0.0
    %102 = vmatprep.subr.mxu0 0.0
    %103 = vmatpush1.msra.mxu0 0.0
    %104 = vmatprep.subr.mxu0 0.0
    %105 = vmatpush1.msra.mxu0 0.0
    %106 = vmatprep.subr.mxu0 0.0
    %107 = vmatpush1.msra.mxu0 0.0
    %108 = vmatprep.subr.mxu0 0.0
    %109 = vmatpush1.msra.mxu0 0.0
    %110 = vmatprep.subr.mxu0 0.0
    %111 = vmatpush1.msra.mxu0 0.0
    %112 = vmatprep.subr.mxu0 0.0
    %113 = vmatpush1.msra.mxu0 0.0
    %114 = vmatprep.subr.mxu0 0.0
    %115 = vmatpush1.msra.mxu0 0.0
    %116 = vmatprep.subr.mxu0 0.0
    %117 = vmatpush1.msra.mxu0 0.0
    %118 = vmatprep.subr.mxu0 0.0
    %119 = vmatpush1.msra.mxu0 0.0
    %120 = vmatprep.subr.mxu0 0.0
    %121 = vmatpush1.msra.mxu0 0.0
    %122 = vmatprep.subr.mxu0 0.0
    %123 = vmatpush1.msra.mxu0 0.0
    %124 = vmatprep.subr.mxu0 0.0
    %125 = vmatpush1.msra.mxu0 0.0
    %126 = vmatprep.subr.mxu0 0.0
    %127 = vmatpush1.msra.mxu0 0.0
    %128 = vmatprep.subr.mxu0 0.0
    %129 = vmatpush1.msra.mxu0 0.0
    %130 = vmatprep.subr.mxu0 0.0
    %131 = vmatpush1.msra.mxu0 0.0
    %132 = vmatprep.subr.mxu0 0.0
    %133 = vmatpush1.msra.mxu0 0.0
    %134 = vmatprep.subr.mxu0 0.0
    %135 = vmatpush1.msra.mxu0 0.0
    %136 = vmatprep.subr.mxu0 0.0
    %137 = vmatpush1.msra.mxu0 0.0
    %138 = vmatprep.subr.mxu0 0.0
    %139 = vmatpush1.msra.mxu0 0.0
    %140 = vmatprep.subr.mxu0 0.0
    %141 = vmatpush1.msra.mxu0 0.0
    %142 = vmatprep.subr.mxu0 0.0
    %143 = vmatpush1.msra.mxu0 0.0
    %144 = vmatprep.subr.mxu0 0.0
    %145 = vmatpush1.msra.mxu0 0.0
    %146 = vmatprep.subr.mxu0 0.0
    %147 = vmatpush1.msra.mxu0 0.0
    %148 = vmatprep.mubr.f32.mxu0 0.0
    %149 = vmatmul.mubr.f32.gmra.mrb[0].mxu0 %v79
    %v150 = vpop.f32.mrb[0].mxu0
    %v151 = vadd.f32 %v65, %v150
    %v152 = vpop.f32.mrb[0].mxu0
    %v153 = vadd.f32 %v69, %v152
    %154 = vmatprep.mubr.f32.mxu0 0.0
    %155 = vmatmul.mubr.f32.gmra.mrb[0].mxu0 %v82
    %v156 = vpop.f32.mrb[0].mxu0
    %v157 = vadd.f32 %v65, %v156
    %v158 = vpop.f32.mrb[0].mxu0
    %v159 = vadd.f32 %v69, %v158
    %160 = vdwg.mxu0
    %161 = vmatprep.subr.mxu0 0.0
    %162 = vmatpush1.msra.mxu0 %v50
    %163 = vmatprep.subr.mxu0 0.0
    %164 = vmatpush1.msra.mxu0 %v53
    %165 = vmatprep.subr.mxu0 0.0
    %166 = vmatpush1.msra.mxu0 %v56
    %167 = vmatprep.subr.mxu0 0.0
    %168 = vmatpush1.msra.mxu0 %v59
    %169 = vmatprep.subr.mxu0 0.0
    %170 = vmatpush1.msra.mxu0 0.0
    %171 = vmatprep.subr.mxu0 0.0
    %172 = vmatpush1.msra.mxu0 0.0
    %173 = vmatprep.subr.mxu0 0.0
    %174 = vmatpush1.msra.mxu0 0.0
    %175 = vmatprep.subr.mxu0 0.0
    %176 = vmatpush1.msra.mxu0 0.0
    %177 = vmatprep.subr.mxu0 0.0
    %178 = vmatpush1.msra.mxu0 0.0
    %179 = vmatprep.subr.mxu0 0.0
    %180 = vmatpush1.msra.mxu0 0.0
    %181 = vmatprep.subr.mxu0 0.0
    %182 = vmatpush1.msra.mxu0 0.0
    %183 = vmatprep.subr.mxu0 0.0
    %184 = vmatpush1.msra.mxu0 0.0
    %185 = vmatprep.subr.mxu0 0.0
    %186 = vmatpush1.msra.mxu0 0.0
    %187 = vmatprep.subr.mxu0 0.0
    %188 = vmatpush1.msra.mxu0 0.0
    %189 = vmatprep.subr.mxu0 0.0
    %190 = vmatpush1.msra.mxu0 0.0
    %191 = vmatprep.subr.mxu0 0.0
    %192 = vmatpush1.msra.mxu0 0.0
    %193 = vmatprep.subr.mxu0 0.0
    %194 = vmatpush1.msra.mxu0 0.0
    %195 = vmatprep.subr.mxu0 0.0
    %196 = vmatpush1.msra.mxu0 0.0
    %197 = vmatprep.subr.mxu0 0.0
    %198 = vmatpush1.msra.mxu0 0.0
    %199 = vmatprep.subr.mxu0 0.0
    %200 = vmatpush1.msra.mxu0 0.0
    %201 = vmatprep.subr.mxu0 0.0
    %202 = vmatpush1.msra.mxu0 0.0
    %203 = vmatprep.subr.mxu0 0.0
    %204 = vmatpush1.msra.mxu0 0.0
    %205 = vmatprep.subr.mxu0 0.0
    %206 = vmatpush1.msra.mxu0 0.0
    %207 = vmatprep.subr.mxu0 0.0
    %208 = vmatpush1.msra.mxu0 0.0
    %209 = vmatprep.subr.mxu0 0.0
    %210 = vmatpush1.msra.mxu0 0.0
    %211 = vmatprep.subr.mxu0 0.0
    %212 = vmatpush1.msra.mxu0 0.0
    %213 = vmatprep.subr.mxu0 0.0
    %214 = vmatpush1.msra.mxu0 0.0
    %215 = vmatprep.subr.mxu0 0.0
    %216 = vmatpush1.msra.mxu0 0.0
    %217 = vmatprep.subr.mxu0 0.0
    %218 = vmatpush1.msra.mxu0 0.0
    %219 = vmatprep.subr.mxu0 0.0
    %220 = vmatpush1.msra.mxu0 0.0
    %221 = vmatprep.subr.mxu0 0.0
    %222 = vmatpush1.msra.mxu0 0.0
    %223 = vmatprep.subr.mxu0 0.0
    %224 = vmatpush1.msra.mxu0 0.0
    %225 = vmatprep.mubr.f32.mxu0 0.0
    %226 = vmatmul.mubr.f32.gmra.mrb[0].mxu0 %v79
    %v227 = vpop.f32.mrb[0].mxu0
    %v228 = vadd.f32 %v73, %v227
    %v229 = vpop.f32.mrb[0].mxu0
    %230 = vmatprep.mubr.f32.mxu0 0.0
    %231 = vmatmul.mubr.f32.gmra.mrb[0].mxu0 %v82
    %v232 = vpop.f32.mrb[0].mxu0
    %v233 = vadd.f32 %v73, %v232
    %v234 = vpop.f32.mrb[0].mxu0
    %235 = vdwg.mxu0
    %236 = vst [vmem:[#allocation7] sm:$0xff] %v151
    %237 = vst [vmem:[#allocation7 + $0x8] sm:$0xff] %v153
    %238 = vst [vmem:[#allocation7 + $0x10] sm:$0xff] %v157
    %239 = vst [vmem:[#allocation7 + $0x18] sm:$0xff] %v159
    %240 = vst [vmem:[#allocation8] sm:$0xff] %v228
    %241 = vst [vmem:[#allocation8 + $0x8] sm:$0xff] %v233
    // Predicated region
    $region22: #{tpu_custom_call.1} parent=1 // pred_check
      _
    $region23: #{tpu_custom_call.1} parent=1 // pred_check_branch
      %243 = sbr.rel (0) target = $region25
    $region24: #{tpu_custom_call.1} parent=1 // pred_region
      %s245 = ssub.s32 512, 512
      %246 = vsyncadd [#allocation4], %s245
      %s247 = sshll.u32 [#allocation7], 4
      %s248 = int_to_ptr.vmem [resolvable:$true] %s247
      %253 = dma.vmem_to_hbm [thread:$0]  %s248, 512, %s3, [#allocation4], 256, 256, 16
    $region25: #{tpu_custom_call.1} parent=1 // pred_fallthru
      _
    // Predicated region
    $region26: #{tpu_custom_call.1} parent=1 // pred_check
      _
    $region27: #{tpu_custom_call.1} parent=1 // pred_check_branch
      %255 = sbr.rel (0) target = $region29
    $region28: #{tpu_custom_call.1} parent=1 // pred_region
      %s257 = ssub.s32 256, 256
      %258 = vsyncadd [#allocation9], %s257
      %s259 = sshll.u32 [#allocation8], 4
      %s260 = int_to_ptr.vmem [resolvable:$true] %s259
      %265 = dma.vmem_to_hbm [thread:$0]  %s260, 256, %s4, [#allocation9], 128, 128, 8
    $region29: #{tpu_custom_call.1} parent=1 // pred_fallthru
      _
    // Predicated region
    $region30: #{tpu_custom_call.1} parent=1 // pred_check
      _
    $region31: #{tpu_custom_call.1} parent=1 // pred_check_branch
      %267 = sbr.rel (0) target = $region33
    $region32: #{tpu_custom_call.1} parent=1 // pred_region
      %268 = dma.done [#allocation4], 512
    $region33: #{tpu_custom_call.1} parent=1 // pred_fallthru
      _
    // Predicated region
    $region34: #{tpu_custom_call.1} parent=1 // pred_check
      _
    $region35: #{tpu_custom_call.1} parent=1 // pred_check_branch
      %270 = sbr.rel (0) target = $region37
    $region36: #{tpu_custom_call.1} parent=1 // pred_region
      %271 = dma.done [#allocation9], 256
    $region37: #{tpu_custom_call.1} parent=1 // pred_fallthru
      _
    %272 = vsyncpa [#allocation3], 1
    %273 = vsyncpa [#allocation6], 1
    %274 = vsyncpa [#allocation4], 1
    %275 = vsyncpa [#allocation9], 1

</llo_original>
